<compile_context>
chip_gen: v7x
topology: tpu7x:2x2x1
jax: 0.10.0
libtpu: 0.0.40
codegen_flags: <defaults>
</compile_context>

<pallas_src>
import functools

import jax
import jax.numpy as jnp
from jax.experimental import pallas as pl
from jax.experimental.pallas import tpu as pltpu


def _dice_stats_kernel(x_ref, t_ref, acc_ref, *, n_classes):
    """Accumulates per-(n, split, class) partial dice statistics.

    x_ref:   (1, C, S, 128)          logits block (native dtype)
    t_ref:   (1, S, 128)             int8 labels block (ignore already mapped to 0)
    acc_ref: (1, 1, 3, C, R, 128)    f32 resident accumulators
             stat axis: 0 = intersection, 1 = prob sum, 2 = target sum
    """
    step = pl.program_id(2)

    @pl.when(step == 0)
    def _init():
        acc_ref[...] = jnp.zeros_like(acc_ref)

    t = t_ref[0].astype(jnp.int32)                        # (S, 128)

    # Numerically-stable softmax over the class axis, unrolled over C.
    m = x_ref[0, 0].astype(jnp.float32)
    for c in range(1, n_classes):
        m = jnp.maximum(m, x_ref[0, c].astype(jnp.float32))

    # exp(x_c - m) computed exactly once per class and cached (perf review).
    es = [jnp.exp(x_ref[0, c].astype(jnp.float32) - m) for c in range(n_classes)]
    denom = es[0]
    for c in range(1, n_classes):
        denom = denom + es[c]

    # EUP approximate reciprocal + one Newton-Raphson step (denom >= 1).
    r = pl.reciprocal(denom, approx=True)
    inv = r * (2.0 - denom * r)

    s_rows = t.shape[0]
    aligned = (s_rows % 8 == 0)

    def lane_partial(v):                                  # (S,128) -> (R,128)
        if aligned:
            # Pure VALU: add S/8 aligned (8,128) slabs, no cross-sublane XLU.
            return v.reshape(s_rows // 8, 8, v.shape[-1]).sum(axis=0)
        return v.sum(axis=0, keepdims=True)               # small/unaligned tail

    for c in range(n_classes):
        p_c = es[c] * inv                                 # softmax prob for class c
        hit = t == c                                      # boolean one-hot slice
        acc_ref[0, 0, 0, c] += lane_partial(jnp.where(hit, p_c, 0.0))
        acc_ref[0, 0, 1, c] += lane_partial(p_c)
        acc_ref[0, 0, 2, c] += lane_partial(hit.astype(jnp.float32))


def _vmem_budgets():
    """(per-step HBM byte budget, vmem_limit_bytes), tuned per TPU generation."""
    cap = 128 * 1024 * 1024
    try:
        info = pltpu.get_tpu_info()
        cap = int(getattr(info, "vmem_capacity_bytes", cap))
    except Exception:
        pass
    if cap <= 64 * 1024 * 1024:            # v7x-class: 64 MiB VMEM per TensorCore
        return 3 * 1024 * 1024, 32 * 1024 * 1024
    return 8 * 1024 * 1024, 48 * 1024 * 1024


def _choose_spatial_block(hw128, n_classes, logit_itemsize, target_itemsize,
                          step_bytes_budget, vmem_bytes_budget):
    """Largest 32-row-aligned divisor of hw128 fitting both HBM and VMEM budgets."""
    hbm_row = 128 * (n_classes * logit_itemsize + target_itemsize)
    # Double-buffered inputs + cached exp(x_c - m) + a handful of f32 temps.
    vmem_row = 128 * (2 * (n_classes * logit_itemsize + target_itemsize)
                      + (n_classes + 4) * 4)
    max_s = min(step_bytes_budget // hbm_row, vmem_bytes_budget // vmem_row)
    max_s = int(max(1, max_s))
    if max_s >= hw128:
        return hw128
    # 32-row alignment covers f32 (8), bf16 (16) and int8 (32) sublane packing.
    start = max_s - (max_s % 32)
    for s in range(start, 0, -32):
        if hw128 % s == 0:
            return s
    # TODO(synk): class-tile (two-pass) / spatial-pad for very large C or odd
    # spatial extents; this full-extent fallback can exceed the VMEM budget.
    return hw128


def multiclass_dice_loss(logits_nchw, target_nhw, *, weight=1.0,
                         ignore_index=255):
    """Forward of MultiClassDiceLoss. logits: (N, C, H, W); target: (N, H, W)."""
    N, C, H, W = logits_nchw.shape
    HW = H * W
    # TODO(synk): pad/mask the spatial tail when H*W is not a multiple of 128.
    assert HW % 128 == 0, "H*W must be a multiple of 128"
    hw128 = HW // 128

    x = logits_nchw.reshape(N, C, hw128, 128)          # native dtype on the wire
    # ignore_index handling (matches `target * (target != ignore_index)`),
    # then labels travel as int8 -> 1 B/pixel of HBM traffic.
    t_small = jnp.where(target_nhw == ignore_index, 0, target_nhw)
    t = t_small.reshape(N, hw128, 128).astype(jnp.int8)

    step_budget, vmem_limit = _vmem_budgets()
    s_block = _choose_spatial_block(hw128, C, x.dtype.itemsize, 1,
                                    step_budget, int(0.6 * vmem_limit))
    num_chunks = hw128 // s_block
    # Second parallel axis so v7x's two TensorCores stay busy even when N == 1.
    n_split = 2 if (num_chunks % 2 == 0 and num_chunks >= 2) else 1
    chunks_per_split = num_chunks // n_split
    r_rows = 8 if s_block % 8 == 0 else 1

    kernel = functools.partial(_dice_stats_kernel, n_classes=C)

    out_shape = jax.ShapeDtypeStruct((N, n_split, 3, C, r_rows, 128), jnp.float32)
    acc_spec = pl.BlockSpec((1, 1, 3, C, r_rows, 128),
                            lambda n, sp, i: (n, sp, 0, 0, 0, 0))

    stats = pl.pallas_call(
        kernel,
        out_shape=out_shape,
        grid_spec=pltpu.PrefetchScalarGridSpec(
            num_scalar_prefetch=0,
            grid=(N, n_split, chunks_per_split),
            in_specs=[
                pl.BlockSpec((1, C, s_block, 128),
                             lambda n, sp, i: (n, 0, sp * chunks_per_split + i, 0)),
                pl.BlockSpec((1, s_block, 128),
                             lambda n, sp, i: (n, sp * chunks_per_split + i, 0)),
            ],
            out_specs=acc_spec,
        ),
        compiler_params=pltpu.CompilerParams(
            dimension_semantics=("parallel", "parallel", "arbitrary"),
            vmem_limit_bytes=vmem_limit),
    )(x, t)

    # Cheap epilogue in plain JAX: split/sublane/lane reduce + dice + scalars.
    per_nc = stats.sum(axis=(1, 4, 5))                      # (N, 3, C)
    inter, psum, tsum = per_nc[:, 0], per_nc[:, 1], per_nc[:, 2]
    smooth = jnp.float32(1.0)
    dice = (2.0 * inter + smooth) / (psum + tsum + smooth)  # (N, C)
    per_class = 1.0 - dice.sum(0) / N                       # (C,)
    return jnp.float32(weight) * per_class.sum() / C


def _reference_loss(logits, target, *, weight=1.0, ignore_index=255):
    N, C, H, W = logits.shape
    mask = (target != ignore_index)
    tgt = target * mask
    onehot = jax.nn.one_hot(tgt, C, axis=1, dtype=jnp.float32)   # (N, C, H, W)
    p = jax.nn.softmax(logits.astype(jnp.float32), axis=1)
    pf = p.reshape(N, C, -1)
    tf = onehot.reshape(N, C, -1)
    smooth = 1.0
    inter = (pf * tf).sum(-1)
    dice = (2.0 * inter + smooth) / (pf.sum(-1) + tf.sum(-1) + smooth)
    per_class = 1.0 - dice.sum(0) / N
    return weight * per_class.sum() / C


if __name__ == "__main__":
    key = jax.random.PRNGKey(0)
    k1, k2, k3 = jax.random.split(key, 3)

    N, C, H, W = 2, 4, 16, 16
    logits = jax.random.normal(k1, (N, C, H, W), dtype=jnp.float32)
    target = jax.random.randint(k2, (N, H, W), 0, C, dtype=jnp.int32)
    # sprinkle some ignore_index pixels
    ignore_mask = jax.random.bernoulli(k3, 0.1, (N, H, W))
    target = jnp.where(ignore_mask, jnp.int32(255), target)

    loss = multiclass_dice_loss(logits, target, weight=1.0, ignore_index=255)
    loss = jax.block_until_ready(loss)

    ref = _reference_loss(logits, target, weight=1.0, ignore_index=255)
    assert jnp.allclose(loss, ref, atol=1e-5, rtol=1e-5), (loss, ref)

    print("KERNEL_OK")
</pallas_src>

<mosaic_0001>
module attributes {stable_mosaic.version = 11 : i64} {
  func.func @_dice_stats_kernel(%arg0: i32, %arg1: i32, %arg2: i32, %arg3: memref<1x4x2x128xf32, #tpu.memory_space<vmem>>, %arg4: memref<1x2x128xi8, #tpu.memory_space<vmem>>, %arg5: memref<1x1x3x4x1x128xf32, #tpu.memory_space<vmem>>) attributes {dimension_semantics = [#tpu.dimension_semantics<parallel>, #tpu.dimension_semantics<parallel>, #tpu.dimension_semantics<arbitrary>], iteration_bounds = array<i64: 2, 1, 1>, scalar_prefetch = 0 : i64, scratch_operands = 0 : i64, tpu.core_type = #tpu.core_type<tc>, window_params = [{transform_indices = @transform_0, window_bounds = array<i64: 1, 4, 2, 128>}, {transform_indices = @transform_1, window_bounds = array<i64: 1, 2, 128>}, {transform_indices = @transform_2, window_bounds = array<i64: 1, 1, 3, 4, 1, 128>}]} {
    %c0_i32 = arith.constant 0 : i32
    %0 = arith.cmpi eq, %arg2, %c0_i32 : i32
    %1 = arith.extui %0 : i1 to i32
    %c0_i32_0 = arith.constant 0 : i32
    %2 = arith.cmpi ne, %1, %c0_i32_0 : i32
    scf.if %2 {
      %cst_193 = arith.constant 0.000000e+00 : f32
      %165 = vector.broadcast %cst_193 : f32 to vector<1x1x3x4x1x128xf32>
      %c0_194 = arith.constant 0 : index
      %c0_195 = arith.constant 0 : index
      %c0_196 = arith.constant 0 : index
      %c0_197 = arith.constant 0 : index
      %c0_198 = arith.constant 0 : index
      %c0_199 = arith.constant 0 : index
      %166 = vector.load %arg5[%c0_194, %c0_195, %c0_196, %c0_197, %c0_198, %c0_199] : memref<1x1x3x4x1x128xf32, #tpu.memory_space<vmem>>, vector<1x1x3x4x1x128xf32>
      tpu.vector_store %arg5[%c0_194, %c0_195, %c0_196, %c0_197, %c0_198, %c0_199], %165 {strides = array<i32>} : memref<1x1x3x4x1x128xf32, #tpu.memory_space<vmem>>, vector<1x1x3x4x1x128xf32>,
    } else {
    }
    %c0 = arith.constant 0 : index
    %c0_1 = arith.constant 0 : index
    %c0_2 = arith.constant 0 : index
    %3 = vector.load %arg4[%c0, %c0_1, %c0_2] : memref<1x2x128xi8, #tpu.memory_space<vmem>>, vector<1x2x128xi8>
    %4 = vector.shape_cast %3 : vector<1x2x128xi8> to vector<2x128xi8>
    %5 = arith.extsi %4 : vector<2x128xi8> to vector<2x128xi32>
    %c0_3 = arith.constant 0 : index
    %c0_4 = arith.constant 0 : index
    %c0_5 = arith.constant 0 : index
    %c0_6 = arith.constant 0 : index
    %6 = vector.load %arg3[%c0_3, %c0_4, %c0_5, %c0_6] : memref<1x4x2x128xf32, #tpu.memory_space<vmem>>, vector<1x1x2x128xf32>
    %7 = vector.shape_cast %6 : vector<1x1x2x128xf32> to vector<2x128xf32>
    %c0_7 = arith.constant 0 : index
    %c1 = arith.constant 1 : index
    %c0_8 = arith.constant 0 : index
    %c0_9 = arith.constant 0 : index
    %8 = vector.load %arg3[%c0_7, %c1, %c0_8, %c0_9] : memref<1x4x2x128xf32, #tpu.memory_space<vmem>>, vector<1x1x2x128xf32>
    %9 = vector.shape_cast %8 : vector<1x1x2x128xf32> to vector<2x128xf32>
    %10 = arith.maximumf %7, %9 : vector<2x128xf32>
    %c0_10 = arith.constant 0 : index
    %c2 = arith.constant 2 : index
    %c0_11 = arith.constant 0 : index
    %c0_12 = arith.constant 0 : index
    %11 = vector.load %arg3[%c0_10, %c2, %c0_11, %c0_12] : memref<1x4x2x128xf32, #tpu.memory_space<vmem>>, vector<1x1x2x128xf32>
    %12 = vector.shape_cast %11 : vector<1x1x2x128xf32> to vector<2x128xf32>
    %13 = arith.maximumf %10, %12 : vector<2x128xf32>
    %c0_13 = arith.constant 0 : index
    %c3 = arith.constant 3 : index
    %c0_14 = arith.constant 0 : index
    %c0_15 = arith.constant 0 : index
    %14 = vector.load %arg3[%c0_13, %c3, %c0_14, %c0_15] : memref<1x4x2x128xf32, #tpu.memory_space<vmem>>, vector<1x1x2x128xf32>
    %15 = vector.shape_cast %14 : vector<1x1x2x128xf32> to vector<2x128xf32>
    %16 = arith.maximumf %13, %15 : vector<2x128xf32>
    %c0_16 = arith.constant 0 : index
    %c0_17 = arith.constant 0 : index
    %c0_18 = arith.constant 0 : index
    %c0_19 = arith.constant 0 : index
    %17 = vector.load %arg3[%c0_16, %c0_17, %c0_18, %c0_19] : memref<1x4x2x128xf32, #tpu.memory_space<vmem>>, vector<1x1x2x128xf32>
    %18 = vector.shape_cast %17 : vector<1x1x2x128xf32> to vector<2x128xf32>
    %19 = arith.subf %18, %16 : vector<2x128xf32>
    %20 = math.exp %19 : vector<2x128xf32>
    %c0_20 = arith.constant 0 : index
    %c1_21 = arith.constant 1 : index
    %c0_22 = arith.constant 0 : index
    %c0_23 = arith.constant 0 : index
    %21 = vector.load %arg3[%c0_20, %c1_21, %c0_22, %c0_23] : memref<1x4x2x128xf32, #tpu.memory_space<vmem>>, vector<1x1x2x128xf32>
    %22 = vector.shape_cast %21 : vector<1x1x2x128xf32> to vector<2x128xf32>
    %23 = arith.subf %22, %16 : vector<2x128xf32>
    %24 = math.exp %23 : vector<2x128xf32>
    %c0_24 = arith.constant 0 : index
    %c2_25 = arith.constant 2 : index
    %c0_26 = arith.constant 0 : index
    %c0_27 = arith.constant 0 : index
    %25 = vector.load %arg3[%c0_24, %c2_25, %c0_26, %c0_27] : memref<1x4x2x128xf32, #tpu.memory_space<vmem>>, vector<1x1x2x128xf32>
    %26 = vector.shape_cast %25 : vector<1x1x2x128xf32> to vector<2x128xf32>
    %27 = arith.subf %26, %16 : vector<2x128xf32>
    %28 = math.exp %27 : vector<2x128xf32>
    %c0_28 = arith.constant 0 : index
    %c3_29 = arith.constant 3 : index
    %c0_30 = arith.constant 0 : index
    %c0_31 = arith.constant 0 : index
    %29 = vector.load %arg3[%c0_28, %c3_29, %c0_30, %c0_31] : memref<1x4x2x128xf32, #tpu.memory_space<vmem>>, vector<1x1x2x128xf32>
    %30 = vector.shape_cast %29 : vector<1x1x2x128xf32> to vector<2x128xf32>
    %31 = arith.subf %30, %16 : vector<2x128xf32>
    %32 = math.exp %31 : vector<2x128xf32>
    %33 = arith.addf %20, %24 : vector<2x128xf32>
    %34 = arith.addf %33, %28 : vector<2x128xf32>
    %35 = arith.addf %34, %32 : vector<2x128xf32>
    %36 = tpu.reciprocal %35 {approx = true} : vector<2x128xf32> -> vector<2x128xf32>
    %37 = arith.mulf %35, %36 : vector<2x128xf32>
    %cst = arith.constant 2.000000e+00 : f32
    %38 = vector.broadcast %cst : f32 to vector<2x128xf32>
    %39 = arith.subf %38, %37 : vector<2x128xf32>
    %40 = arith.mulf %36, %39 : vector<2x128xf32>
    %41 = arith.mulf %20, %40 : vector<2x128xf32>
    %c0_i32_32 = arith.constant 0 : i32
    %42 = vector.broadcast %c0_i32_32 : i32 to vector<2x128xi32>
    %43 = arith.cmpi eq, %5, %42 : vector<2x128xi32>
    %c0_33 = arith.constant 0 : index
    %c0_34 = arith.constant 0 : index
    %c0_35 = arith.constant 0 : index
    %c0_36 = arith.constant 0 : index
    %c0_37 = arith.constant 0 : index
    %c0_38 = arith.constant 0 : index
    %44 = vector.load %arg5[%c0_33, %c0_34, %c0_35, %c0_36, %c0_37, %c0_38] : memref<1x1x3x4x1x128xf32, #tpu.memory_space<vmem>>, vector<1x1x1x1x1x128xf32>
    %45 = vector.shape_cast %44 : vector<1x1x1x1x1x128xf32> to vector<1x128xf32>
    %cst_39 = arith.constant 0.000000e+00 : f32
    %46 = vector.broadcast %cst_39 : f32 to vector<2x128xf32>
    %47 = arith.select %43, %41, %46 : vector<2x128xi1>, vector<2x128xf32>
    %cst_40 = arith.constant dense<0.000000e+00> : vector<128xf32>
    %48 = vector.multi_reduction <add>, %47, %cst_40 [0] : vector<2x128xf32> to vector<128xf32>
    %49 = vector.shape_cast %48 : vector<128xf32> to vector<1x128xf32>
    %50 = arith.addf %45, %49 : vector<1x128xf32>
    %c0_41 = arith.constant 0 : index
    %c0_42 = arith.constant 0 : index
    %c0_43 = arith.constant 0 : index
    %c0_44 = arith.constant 0 : index
    %c0_45 = arith.constant 0 : index
    %c0_46 = arith.constant 0 : index
    %51 = vector.load %arg5[%c0_41, %c0_42, %c0_43, %c0_44, %c0_45, %c0_46] : memref<1x1x3x4x1x128xf32, #tpu.memory_space<vmem>>, vector<1x1x1x1x1x128xf32>
    %52 = vector.shape_cast %51 : vector<1x1x1x1x1x128xf32> to vector<1x128xf32>
    %53 = vector.shape_cast %50 : vector<1x128xf32> to vector<1x1x1x1x1x128xf32>
    tpu.vector_store %arg5[%c0_41, %c0_42, %c0_43, %c0_44, %c0_45, %c0_46], %53 {strides = array<i32>} : memref<1x1x3x4x1x128xf32, #tpu.memory_space<vmem>>, vector<1x1x1x1x1x128xf32>,
    %c0_47 = arith.constant 0 : index
    %c0_48 = arith.constant 0 : index
    %c1_49 = arith.constant 1 : index
    %c0_50 = arith.constant 0 : index
    %c0_51 = arith.constant 0 : index
    %c0_52 = arith.constant 0 : index
    %54 = vector.load %arg5[%c0_47, %c0_48, %c1_49, %c0_50, %c0_51, %c0_52] : memref<1x1x3x4x1x128xf32, #tpu.memory_space<vmem>>, vector<1x1x1x1x1x128xf32>
    %55 = vector.shape_cast %54 : vector<1x1x1x1x1x128xf32> to vector<1x128xf32>
    %cst_53 = arith.constant dense<0.000000e+00> : vector<128xf32>
    %56 = vector.multi_reduction <add>, %41, %cst_53 [0] : vector<2x128xf32> to vector<128xf32>
    %57 = vector.shape_cast %56 : vector<128xf32> to vector<1x128xf32>
    %58 = arith.addf %55, %57 : vector<1x128xf32>
    %c0_54 = arith.constant 0 : index
    %c0_55 = arith.constant 0 : index
    %c1_56 = arith.constant 1 : index
    %c0_57 = arith.constant 0 : index
    %c0_58 = arith.constant 0 : index
    %c0_59 = arith.constant 0 : index
    %59 = vector.load %arg5[%c0_54, %c0_55, %c1_56, %c0_57, %c0_58, %c0_59] : memref<1x1x3x4x1x128xf32, #tpu.memory_space<vmem>>, vector<1x1x1x1x1x128xf32>
    %60 = vector.shape_cast %59 : vector<1x1x1x1x1x128xf32> to vector<1x128xf32>
    %61 = vector.shape_cast %58 : vector<1x128xf32> to vector<1x1x1x1x1x128xf32>
    tpu.vector_store %arg5[%c0_54, %c0_55, %c1_56, %c0_57, %c0_58, %c0_59], %61 {strides = array<i32>} : memref<1x1x3x4x1x128xf32, #tpu.memory_space<vmem>>, vector<1x1x1x1x1x128xf32>,
    %c0_60 = arith.constant 0 : index
    %c0_61 = arith.constant 0 : index
    %c2_62 = arith.constant 2 : index
    %c0_63 = arith.constant 0 : index
    %c0_64 = arith.constant 0 : index
    %c0_65 = arith.constant 0 : index
    %62 = vector.load %arg5[%c0_60, %c0_61, %c2_62, %c0_63, %c0_64, %c0_65] : memref<1x1x3x4x1x128xf32, #tpu.memory_space<vmem>>, vector<1x1x1x1x1x128xf32>
    %63 = vector.shape_cast %62 : vector<1x1x1x1x1x128xf32> to vector<1x128xf32>
    %64 = arith.extui %43 : vector<2x128xi1> to vector<2x128xi32>
    %65 = arith.sitofp %64 : vector<2x128xi32> to vector<2x128xf32>
    %cst_66 = arith.constant dense<0.000000e+00> : vector<128xf32>
    %66 = vector.multi_reduction <add>, %65, %cst_66 [0] : vector<2x128xf32> to vector<128xf32>
    %67 = vector.shape_cast %66 : vector<128xf32> to vector<1x128xf32>
    %68 = arith.addf %63, %67 : vector<1x128xf32>
    %c0_67 = arith.constant 0 : index
    %c0_68 = arith.constant 0 : index
    %c2_69 = arith.constant 2 : index
    %c0_70 = arith.constant 0 : index
    %c0_71 = arith.constant 0 : index
    %c0_72 = arith.constant 0 : index
    %69 = vector.load %arg5[%c0_67, %c0_68, %c2_69, %c0_70, %c0_71, %c0_72] : memref<1x1x3x4x1x128xf32, #tpu.memory_space<vmem>>, vector<1x1x1x1x1x128xf32>
    %70 = vector.shape_cast %69 : vector<1x1x1x1x1x128xf32> to vector<1x128xf32>
    %71 = vector.shape_cast %68 : vector<1x128xf32> to vector<1x1x1x1x1x128xf32>
    tpu.vector_store %arg5[%c0_67, %c0_68, %c2_69, %c0_70, %c0_71, %c0_72], %71 {strides = array<i32>} : memref<1x1x3x4x1x128xf32, #tpu.memory_space<vmem>>, vector<1x1x1x1x1x128xf32>,
    %72 = arith.mulf %24, %40 : vector<2x128xf32>
    %c1_i32 = arith.constant 1 : i32
    %73 = vector.broadcast %c1_i32 : i32 to vector<2x128xi32>
    %74 = arith.cmpi eq, %5, %73 : vector<2x128xi32>
    %c0_73 = arith.constant 0 : index
    %c0_74 = arith.constant 0 : index
    %c0_75 = arith.constant 0 : index
    %c1_76 = arith.constant 1 : index
    %c0_77 = arith.constant 0 : index
    %c0_78 = arith.constant 0 : index
    %75 = vector.load %arg5[%c0_73, %c0_74, %c0_75, %c1_76, %c0_77, %c0_78] : memref<1x1x3x4x1x128xf32, #tpu.memory_space<vmem>>, vector<1x1x1x1x1x128xf32>
    %76 = vector.shape_cast %75 : vector<1x1x1x1x1x128xf32> to vector<1x128xf32>
    %cst_79 = arith.constant 0.000000e+00 : f32
    %77 = vector.broadcast %cst_79 : f32 to vector<2x128xf32>
    %78 = arith.select %74, %72, %77 : vector<2x128xi1>, vector<2x128xf32>
    %cst_80 = arith.constant dense<0.000000e+00> : vector<128xf32>
    %79 = vector.multi_reduction <add>, %78, %cst_80 [0] : vector<2x128xf32> to vector<128xf32>
    %80 = vector.shape_cast %79 : vector<128xf32> to vector<1x128xf32>
    %81 = arith.addf %76, %80 : vector<1x128xf32>
    %c0_81 = arith.constant 0 : index
    %c0_82 = arith.constant 0 : index
    %c0_83 = arith.constant 0 : index
    %c1_84 = arith.constant 1 : index
    %c0_85 = arith.constant 0 : index
    %c0_86 = arith.constant 0 : index
    %82 = vector.load %arg5[%c0_81, %c0_82, %c0_83, %c1_84, %c0_85, %c0_86] : memref<1x1x3x4x1x128xf32, #tpu.memory_space<vmem>>, vector<1x1x1x1x1x128xf32>
    %83 = vector.shape_cast %82 : vector<1x1x1x1x1x128xf32> to vector<1x128xf32>
    %84 = vector.shape_cast %81 : vector<1x128xf32> to vector<1x1x1x1x1x128xf32>
    tpu.vector_store %arg5[%c0_81, %c0_82, %c0_83, %c1_84, %c0_85, %c0_86], %84 {strides = array<i32>} : memref<1x1x3x4x1x128xf32, #tpu.memory_space<vmem>>, vector<1x1x1x1x1x128xf32>,
    %c0_87 = arith.constant 0 : index
    %c0_88 = arith.constant 0 : index
    %c1_89 = arith.constant 1 : index
    %c1_90 = arith.constant 1 : index
    %c0_91 = arith.constant 0 : index
    %c0_92 = arith.constant 0 : index
    %85 = vector.load %arg5[%c0_87, %c0_88, %c1_89, %c1_90, %c0_91, %c0_92] : memref<1x1x3x4x1x128xf32, #tpu.memory_space<vmem>>, vector<1x1x1x1x1x128xf32>
    %86 = vector.shape_cast %85 : vector<1x1x1x1x1x128xf32> to vector<1x128xf32>
    %cst_93 = arith.constant dense<0.000000e+00> : vector<128xf32>
    %87 = vector.multi_reduction <add>, %72, %cst_93 [0] : vector<2x128xf32> to vector<128xf32>
    %88 = vector.shape_cast %87 : vector<128xf32> to vector<1x128xf32>
    %89 = arith.addf %86, %88 : vector<1x128xf32>
    %c0_94 = arith.constant 0 : index
    %c0_95 = arith.constant 0 : index
    %c1_96 = arith.constant 1 : index
    %c1_97 = arith.constant 1 : index
    %c0_98 = arith.constant 0 : index
    %c0_99 = arith.constant 0 : index
    %90 = vector.load %arg5[%c0_94, %c0_95, %c1_96, %c1_97, %c0_98, %c0_99] : memref<1x1x3x4x1x128xf32, #tpu.memory_space<vmem>>, vector<1x1x1x1x1x128xf32>
    %91 = vector.shape_cast %90 : vector<1x1x1x1x1x128xf32> to vector<1x128xf32>
    %92 = vector.shape_cast %89 : vector<1x128xf32> to vector<1x1x1x1x1x128xf32>
    tpu.vector_store %arg5[%c0_94, %c0_95, %c1_96, %c1_97, %c0_98, %c0_99], %92 {strides = array<i32>} : memref<1x1x3x4x1x128xf32, #tpu.memory_space<vmem>>, vector<1x1x1x1x1x128xf32>,
    %c0_100 = arith.constant 0 : index
    %c0_101 = arith.constant 0 : index
    %c2_102 = arith.constant 2 : index
    %c1_103 = arith.constant 1 : index
    %c0_104 = arith.constant 0 : index
    %c0_105 = arith.constant 0 : index
    %93 = vector.load %arg5[%c0_100, %c0_101, %c2_102, %c1_103, %c0_104, %c0_105] : memref<1x1x3x4x1x128xf32, #tpu.memory_space<vmem>>, vector<1x1x1x1x1x128xf32>
    %94 = vector.shape_cast %93 : vector<1x1x1x1x1x128xf32> to vector<1x128xf32>
    %95 = arith.extui %74 : vector<2x128xi1> to vector<2x128xi32>
    %96 = arith.sitofp %95 : vector<2x128xi32> to vector<2x128xf32>
    %cst_106 = arith.constant dense<0.000000e+00> : vector<128xf32>
    %97 = vector.multi_reduction <add>, %96, %cst_106 [0] : vector<2x128xf32> to vector<128xf32>
    %98 = vector.shape_cast %97 : vector<128xf32> to vector<1x128xf32>
    %99 = arith.addf %94, %98 : vector<1x128xf32>
    %c0_107 = arith.constant 0 : index
    %c0_108 = arith.constant 0 : index
    %c2_109 = arith.constant 2 : index
    %c1_110 = arith.constant 1 : index
    %c0_111 = arith.constant 0 : index
    %c0_112 = arith.constant 0 : index
    %100 = vector.load %arg5[%c0_107, %c0_108, %c2_109, %c1_110, %c0_111, %c0_112] : memref<1x1x3x4x1x128xf32, #tpu.memory_space<vmem>>, vector<1x1x1x1x1x128xf32>
    %101 = vector.shape_cast %100 : vector<1x1x1x1x1x128xf32> to vector<1x128xf32>
    %102 = vector.shape_cast %99 : vector<1x128xf32> to vector<1x1x1x1x1x128xf32>
    tpu.vector_store %arg5[%c0_107, %c0_108, %c2_109, %c1_110, %c0_111, %c0_112], %102 {strides = array<i32>} : memref<1x1x3x4x1x128xf32, #tpu.memory_space<vmem>>, vector<1x1x1x1x1x128xf32>,
    %103 = arith.mulf %28, %40 : vector<2x128xf32>
    %c2_i32 = arith.constant 2 : i32
    %104 = vector.broadcast %c2_i32 : i32 to vector<2x128xi32>
    %105 = arith.cmpi eq, %5, %104 : vector<2x128xi32>
    %c0_113 = arith.constant 0 : index
    %c0_114 = arith.constant 0 : index
    %c0_115 = arith.constant 0 : index
    %c2_116 = arith.constant 2 : index
    %c0_117 = arith.constant 0 : index
    %c0_118 = arith.constant 0 : index
    %106 = vector.load %arg5[%c0_113, %c0_114, %c0_115, %c2_116, %c0_117, %c0_118] : memref<1x1x3x4x1x128xf32, #tpu.memory_space<vmem>>, vector<1x1x1x1x1x128xf32>
    %107 = vector.shape_cast %106 : vector<1x1x1x1x1x128xf32> to vector<1x128xf32>
    %cst_119 = arith.constant 0.000000e+00 : f32
    %108 = vector.broadcast %cst_119 : f32 to vector<2x128xf32>
    %109 = arith.select %105, %103, %108 : vector<2x128xi1>, vector<2x128xf32>
    %cst_120 = arith.constant dense<0.000000e+00> : vector<128xf32>
    %110 = vector.multi_reduction <add>, %109, %cst_120 [0] : vector<2x128xf32> to vector<128xf32>
    %111 = vector.shape_cast %110 : vector<128xf32> to vector<1x128xf32>
    %112 = arith.addf %107, %111 : vector<1x128xf32>
    %c0_121 = arith.constant 0 : index
    %c0_122 = arith.constant 0 : index
    %c0_123 = arith.constant 0 : index
    %c2_124 = arith.constant 2 : index
    %c0_125 = arith.constant 0 : index
    %c0_126 = arith.constant 0 : index
    %113 = vector.load %arg5[%c0_121, %c0_122, %c0_123, %c2_124, %c0_125, %c0_126] : memref<1x1x3x4x1x128xf32, #tpu.memory_space<vmem>>, vector<1x1x1x1x1x128xf32>
    %114 = vector.shape_cast %113 : vector<1x1x1x1x1x128xf32> to vector<1x128xf32>
    %115 = vector.shape_cast %112 : vector<1x128xf32> to vector<1x1x1x1x1x128xf32>
    tpu.vector_store %arg5[%c0_121, %c0_122, %c0_123, %c2_124, %c0_125, %c0_126], %115 {strides = array<i32>} : memref<1x1x3x4x1x128xf32, #tpu.memory_space<vmem>>, vector<1x1x1x1x1x128xf32>,
    %c0_127 = arith.constant 0 : index
    %c0_128 = arith.constant 0 : index
    %c1_129 = arith.constant 1 : index
    %c2_130 = arith.constant 2 : index
    %c0_131 = arith.constant 0 : index
    %c0_132 = arith.constant 0 : index
    %116 = vector.load %arg5[%c0_127, %c0_128, %c1_129, %c2_130, %c0_131, %c0_132] : memref<1x1x3x4x1x128xf32, #tpu.memory_space<vmem>>, vector<1x1x1x1x1x128xf32>
    %117 = vector.shape_cast %116 : vector<1x1x1x1x1x128xf32> to vector<1x128xf32>
    %cst_133 = arith.constant dense<0.000000e+00> : vector<128xf32>
    %118 = vector.multi_reduction <add>, %103, %cst_133 [0] : vector<2x128xf32> to vector<128xf32>
    %119 = vector.shape_cast %118 : vector<128xf32> to vector<1x128xf32>
    %120 = arith.addf %117, %119 : vector<1x128xf32>
    %c0_134 = arith.constant 0 : index
    %c0_135 = arith.constant 0 : index
    %c1_136 = arith.constant 1 : index
    %c2_137 = arith.constant 2 : index
    %c0_138 = arith.constant 0 : index
    %c0_139 = arith.constant 0 : index
    %121 = vector.load %arg5[%c0_134, %c0_135, %c1_136, %c2_137, %c0_138, %c0_139] : memref<1x1x3x4x1x128xf32, #tpu.memory_space<vmem>>, vector<1x1x1x1x1x128xf32>
    %122 = vector.shape_cast %121 : vector<1x1x1x1x1x128xf32> to vector<1x128xf32>
    %123 = vector.shape_cast %120 : vector<1x128xf32> to vector<1x1x1x1x1x128xf32>
    tpu.vector_store %arg5[%c0_134, %c0_135, %c1_136, %c2_137, %c0_138, %c0_139], %123 {strides = array<i32>} : memref<1x1x3x4x1x128xf32, #tpu.memory_space<vmem>>, vector<1x1x1x1x1x128xf32>,
    %c0_140 = arith.constant 0 : index
    %c0_141 = arith.constant 0 : index
    %c2_142 = arith.constant 2 : index
    %c2_143 = arith.constant 2 : index
    %c0_144 = arith.constant 0 : index
    %c0_145 = arith.constant 0 : index
    %124 = vector.load %arg5[%c0_140, %c0_141, %c2_142, %c2_143, %c0_144, %c0_145] : memref<1x1x3x4x1x128xf32, #tpu.memory_space<vmem>>, vector<1x1x1x1x1x128xf32>
    %125 = vector.shape_cast %124 : vector<1x1x1x1x1x128xf32> to vector<1x128xf32>
    %126 = arith.extui %105 : vector<2x128xi1> to vector<2x128xi32>
    %127 = arith.sitofp %126 : vector<2x128xi32> to vector<2x128xf32>
    %cst_146 = arith.constant dense<0.000000e+00> : vector<128xf32>
    %128 = vector.multi_reduction <add>, %127, %cst_146 [0] : vector<2x128xf32> to vector<128xf32>
    %129 = vector.shape_cast %128 : vector<128xf32> to vector<1x128xf32>
    %130 = arith.addf %125, %129 : vector<1x128xf32>
    %c0_147 = arith.constant 0 : index
    %c0_148 = arith.constant 0 : index
    %c2_149 = arith.constant 2 : index
    %c2_150 = arith.constant 2 : index
    %c0_151 = arith.constant 0 : index
    %c0_152 = arith.constant 0 : index
    %131 = vector.load %arg5[%c0_147, %c0_148, %c2_149, %c2_150, %c0_151, %c0_152] : memref<1x1x3x4x1x128xf32, #tpu.memory_space<vmem>>, vector<1x1x1x1x1x128xf32>
    %132 = vector.shape_cast %131 : vector<1x1x1x1x1x128xf32> to vector<1x128xf32>
    %133 = vector.shape_cast %130 : vector<1x128xf32> to vector<1x1x1x1x1x128xf32>
    tpu.vector_store %arg5[%c0_147, %c0_148, %c2_149, %c2_150, %c0_151, %c0_152], %133 {strides = array<i32>} : memref<1x1x3x4x1x128xf32, #tpu.memory_space<vmem>>, vector<1x1x1x1x1x128xf32>,
    %134 = arith.mulf %32, %40 : vector<2x128xf32>
    %c3_i32 = arith.constant 3 : i32
    %135 = vector.broadcast %c3_i32 : i32 to vector<2x128xi32>
    %136 = arith.cmpi eq, %5, %135 : vector<2x128xi32>
    %c0_153 = arith.constant 0 : index
    %c0_154 = arith.constant 0 : index
    %c0_155 = arith.constant 0 : index
    %c3_156 = arith.constant 3 : index
    %c0_157 = arith.constant 0 : index
    %c0_158 = arith.constant 0 : index
    %137 = vector.load %arg5[%c0_153, %c0_154, %c0_155, %c3_156, %c0_157, %c0_158] : memref<1x1x3x4x1x128xf32, #tpu.memory_space<vmem>>, vector<1x1x1x1x1x128xf32>
    %138 = vector.shape_cast %137 : vector<1x1x1x1x1x128xf32> to vector<1x128xf32>
    %cst_159 = arith.constant 0.000000e+00 : f32
    %139 = vector.broadcast %cst_159 : f32 to vector<2x128xf32>
    %140 = arith.select %136, %134, %139 : vector<2x128xi1>, vector<2x128xf32>
    %cst_160 = arith.constant dense<0.000000e+00> : vector<128xf32>
    %141 = vector.multi_reduction <add>, %140, %cst_160 [0] : vector<2x128xf32> to vector<128xf32>
    %142 = vector.shape_cast %141 : vector<128xf32> to vector<1x128xf32>
    %143 = arith.addf %138, %142 : vector<1x128xf32>
    %c0_161 = arith.constant 0 : index
    %c0_162 = arith.constant 0 : index
    %c0_163 = arith.constant 0 : index
    %c3_164 = arith.constant 3 : index
    %c0_165 = arith.constant 0 : index
    %c0_166 = arith.constant 0 : index
    %144 = vector.load %arg5[%c0_161, %c0_162, %c0_163, %c3_164, %c0_165, %c0_166] : memref<1x1x3x4x1x128xf32, #tpu.memory_space<vmem>>, vector<1x1x1x1x1x128xf32>
    %145 = vector.shape_cast %144 : vector<1x1x1x1x1x128xf32> to vector<1x128xf32>
    %146 = vector.shape_cast %143 : vector<1x128xf32> to vector<1x1x1x1x1x128xf32>
    tpu.vector_store %arg5[%c0_161, %c0_162, %c0_163, %c3_164, %c0_165, %c0_166], %146 {strides = array<i32>} : memref<1x1x3x4x1x128xf32, #tpu.memory_space<vmem>>, vector<1x1x1x1x1x128xf32>,
    %c0_167 = arith.constant 0 : index
    %c0_168 = arith.constant 0 : index
    %c1_169 = arith.constant 1 : index
    %c3_170 = arith.constant 3 : index
    %c0_171 = arith.constant 0 : index
    %c0_172 = arith.constant 0 : index
    %147 = vector.load %arg5[%c0_167, %c0_168, %c1_169, %c3_170, %c0_171, %c0_172] : memref<1x1x3x4x1x128xf32, #tpu.memory_space<vmem>>, vector<1x1x1x1x1x128xf32>
    %148 = vector.shape_cast %147 : vector<1x1x1x1x1x128xf32> to vector<1x128xf32>
    %cst_173 = arith.constant dense<0.000000e+00> : vector<128xf32>
    %149 = vector.multi_reduction <add>, %134, %cst_173 [0] : vector<2x128xf32> to vector<128xf32>
    %150 = vector.shape_cast %149 : vector<128xf32> to vector<1x128xf32>
    %151 = arith.addf %148, %150 : vector<1x128xf32>
    %c0_174 = arith.constant 0 : index
    %c0_175 = arith.constant 0 : index
    %c1_176 = arith.constant 1 : index
    %c3_177 = arith.constant 3 : index
    %c0_178 = arith.constant 0 : index
    %c0_179 = arith.constant 0 : index
    %152 = vector.load %arg5[%c0_174, %c0_175, %c1_176, %c3_177, %c0_178, %c0_179] : memref<1x1x3x4x1x128xf32, #tpu.memory_space<vmem>>, vector<1x1x1x1x1x128xf32>
    %153 = vector.shape_cast %152 : vector<1x1x1x1x1x128xf32> to vector<1x128xf32>
    %154 = vector.shape_cast %151 : vector<1x128xf32> to vector<1x1x1x1x1x128xf32>
    tpu.vector_store %arg5[%c0_174, %c0_175, %c1_176, %c3_177, %c0_178, %c0_179], %154 {strides = array<i32>} : memref<1x1x3x4x1x128xf32, #tpu.memory_space<vmem>>, vector<1x1x1x1x1x128xf32>,
    %c0_180 = arith.constant 0 : index
    %c0_181 = arith.constant 0 : index
    %c2_182 = arith.constant 2 : index
    %c3_183 = arith.constant 3 : index
    %c0_184 = arith.constant 0 : index
    %c0_185 = arith.constant 0 : index
    %155 = vector.load %arg5[%c0_180, %c0_181, %c2_182, %c3_183, %c0_184, %c0_185] : memref<1x1x3x4x1x128xf32, #tpu.memory_space<vmem>>, vector<1x1x1x1x1x128xf32>
    %156 = vector.shape_cast %155 : vector<1x1x1x1x1x128xf32> to vector<1x128xf32>
    %157 = arith.extui %136 : vector<2x128xi1> to vector<2x128xi32>
    %158 = arith.sitofp %157 : vector<2x128xi32> to vector<2x128xf32>
    %cst_186 = arith.constant dense<0.000000e+00> : vector<128xf32>
    %159 = vector.multi_reduction <add>, %158, %cst_186 [0] : vector<2x128xf32> to vector<128xf32>
    %160 = vector.shape_cast %159 : vector<128xf32> to vector<1x128xf32>
    %161 = arith.addf %156, %160 : vector<1x128xf32>
    %c0_187 = arith.constant 0 : index
    %c0_188 = arith.constant 0 : index
    %c2_189 = arith.constant 2 : index
    %c3_190 = arith.constant 3 : index
    %c0_191 = arith.constant 0 : index
    %c0_192 = arith.constant 0 : index
    %162 = vector.load %arg5[%c0_187, %c0_188, %c2_189, %c3_190, %c0_191, %c0_192] : memref<1x1x3x4x1x128xf32, #tpu.memory_space<vmem>>, vector<1x1x1x1x1x128xf32>
    %163 = vector.shape_cast %162 : vector<1x1x1x1x1x128xf32> to vector<1x128xf32>
    %164 = vector.shape_cast %161 : vector<1x128xf32> to vector<1x1x1x1x1x128xf32>
    tpu.vector_store %arg5[%c0_187, %c0_188, %c2_189, %c3_190, %c0_191, %c0_192], %164 {strides = array<i32>} : memref<1x1x3x4x1x128xf32, #tpu.memory_space<vmem>>, vector<1x1x1x1x1x128xf32>,
    return
  }
  func.func @transform_0(%arg0: i32, %arg1: i32, %arg2: i32) -> (i32, i32, i32, i32) {
    %c1_i32 = arith.constant 1 : i32
    %0 = arith.muli %arg1, %c1_i32 : i32
    %1 = arith.addi %0, %arg2 : i32
    %c0_i32 = arith.constant 0 : i32
    %c0_i32_0 = arith.constant 0 : i32
    %c0_i32_1 = arith.constant 0 : i32
    return %arg0, %c0_i32, %1, %c0_i32_0 : i32, i32, i32, i32
  }
  func.func @transform_1(%arg0: i32, %arg1: i32, %arg2: i32) -> (i32, i32, i32) {
    %c1_i32 = arith.constant 1 : i32
    %0 = arith.muli %arg1, %c1_i32 : i32
    %1 = arith.addi %0, %arg2 : i32
    %c0_i32 = arith.constant 0 : i32
    %c0_i32_0 = arith.constant 0 : i32
    return %arg0, %1, %c0_i32 : i32, i32, i32
  }
  func.func @transform_2(%arg0: i32, %arg1: i32, %arg2: i32) -> (i32, i32, i32, i32, i32, i32) {
    %c0_i32 = arith.constant 0 : i32
    %c0_i32_0 = arith.constant 0 : i32
    %c0_i32_1 = arith.constant 0 : i32
    %c0_i32_2 = arith.constant 0 : i32
    %c0_i32_3 = arith.constant 0 : i32
    return %arg0, %arg1, %c0_i32, %c0_i32_0, %c0_i32_1, %c0_i32_2 : i32, i32, i32, i32, i32, i32
  }
}

</mosaic_0001>

<llo_original>
// kernel: tpu_custom_call.1
$region0: #{tpu_custom_call.1}
  #allocation0 [shape = 'u32[]', space=smem, size = 0x4, offset = 0x4, fixed_abs, tag = 'smem constant byte address 0x4 - core index']
  #allocation1 [shape = 'u32[144,128]{1,0:T(1,128)}', space=vmem, size = 0x12000, scoped, tag = 'internal scratch']
  %s0 = inlined_call_operand.hbm [shape: f32[2,4,2,128], index: 0, kind: input, shape index: {}]
  %s1 = inlined_call_operand.vmem [shape: s8[2,2,128], index: 1, kind: input, shape index: {}]
  %s2 = inlined_call_operand.hbm [shape: f32[2,1,3,4,1,128], index: 2, kind: output, shape index: {}]
  %s3 = sld [smem:[#allocation0]]
  $region49: #{tpu_custom_call.1} parent=0
    _
  %s5 = ssub.s32 1, %s3
  %s6 = scalar_select 0, %s5, %s3
  $region1: #{tpu_custom_call.1} parent=0
    #allocation2 [shape = 'u8[8192]{0}', space=vmem, size = 0x2000, scoped, tag = 'input window, operand 0']
    #allocation3 [shape = 's32[2]{0}', space=sflag, size = 0x8, scoped, tag = 'scoped memory for tpu_custom_call.1']
    #allocation4 [shape = 's32[2]{0}', space=sflag, size = 0x8, scoped, tag = 'scoped memory for tpu_custom_call.1']
    #allocation5 [shape = 'u8[12288]{0}', space=vmem, size = 0x3000, scoped, tag = 'output window, operand 0']
    %7 = vsyncpa [#allocation3], 0
    %s8 = scalar_lea.sflag [#allocation3], 1
    %9 = vsyncpa %s8, 0
    %10 = vsyncpa [#allocation4], 0
    %s11 = scalar_lea.sflag [#allocation4], 1
    %12 = vsyncpa %s11, 0
    loop: start=0, step=1, limit=4
    $region2: #{tpu_custom_call.1} parent=1 // loop_pre_header
      _
    $region3: #{tpu_custom_call.1} parent=1 // loop_header
      %s14 = sphi 0, %s18
      %p15 = scmp.ge.s32.totalorder %s14, 4
      %s21 = sphi 0, %s40
      %s22 = sphi 0, %s36
      %s23 = sphi 0, %s32
      %s24 = sphi 0, %s21
      %s25 = sphi 0, %s22
      %s26 = sphi 0, %s23
      %s27 = sphi 0, %s24
      %s28 = sphi 0, %s25
      %s29 = sphi 0, %s26
      %s47 = sphi 0, %s49
      %s50 = sphi 0, %s47
      %s51 = sphi 0, %s50
      %s67 = sphi 0, %s51
      %s77 = sphi 0, %s79
      %s80 = sphi 0, %s77
      %s81 = sphi 0, %s80
      %s97 = sphi 0, %s81
      %s105 = sphi 0, %s107
      %s108 = sphi 0, %s105
      %s109 = sphi 0, %s108
      %s125 = sphi 0, %s109
    $region4: #{tpu_custom_call.1} parent=1 // loop_header_branch
      %17 = sbr.rel (%p15) target = $region8
    $region5: #{tpu_custom_call.1} parent=1 // loop_body
      %s19 = ssub.s32 %s14, 1
      %s20 = ssub.s32 %s14, 2
      %s30 = sadd.s32 1, %s23
      %p31 = scmp.ge.s32.totalorder %s30, 1
      %s32 = scalar_select %p31, 0, %s30
      %s33 = sadd.s32 1, %s22
      %s34 = scalar_select %p31, %s33, %s22
      %p35 = scmp.ge.s32.totalorder %s34, 1
      %s36 = scalar_select %p35, 0, %s34
      %s37 = sadd.s32 1, %s21
      %s38 = scalar_select %p35, %s37, %s21
      %p39 = scmp.ge.s32.totalorder %s38, 2
      %s40 = scalar_select %p39, 0, %s38
      %s41 = sadd.s32 %s22, %s23
      %s42 = sadd.s32 %s36, %s32
      %s43 = ssub.s32 %s21, %s40
      %s44 = ssub.s32 %s41, %s42
      %s45 = sor.u32 %s43, %s44
      %p46 = scmp.eq.s32.totalorder %s45, 0
      %s48 = sadd.s32 %s47, 1
      %s49 = scalar_select %p46, %s47, %s48
      %p52 = pneg %p46
      %p53 = scmp.eq.s32.totalorder %s14, 1
      %p54 = por %p52, %p53
      %p55 = scmp.ne.s32.totalorder %s47, %s50
      %p56 = scmp.eq.s32.totalorder %s14, 0
      %p57 = por %p55, %p56
      %p58 = scmp.ne.s32.totalorder %s47, %s50
      %p59 = scmp.eq.s32.totalorder %s19, 1
      %p60 = por %p58, %p59
      %p61 = scmp.ne.s32.totalorder %s50, %s51
      %p62 = scmp.eq.s32.totalorder %s19, 0
      %p63 = por %p61, %p62
      %p64 = scmp.ne.s32.totalorder %s50, %s51
      %p65 = scmp.eq.s32.totalorder %s20, 1
      %p66 = por %p64, %p65
      %p68 = scmp.ne.s32.totalorder %s51, %s67
      %p69 = scmp.eq.s32.totalorder %s20, 0
      %p70 = por %p68, %p69
      %s71 = sadd.s32 %s22, %s23
      %s72 = sadd.s32 %s36, %s32
      %s73 = ssub.s32 %s21, %s40
      %s74 = ssub.s32 %s71, %s72
      %s75 = sor.u32 %s73, %s74
      %p76 = scmp.eq.s32.totalorder %s75, 0
      %s78 = sadd.s32 %s77, 1
      %s79 = scalar_select %p76, %s77, %s78
      %p82 = pneg %p76
      %p83 = scmp.eq.s32.totalorder %s14, 1
      %p84 = por %p82, %p83
      %p85 = scmp.ne.s32.totalorder %s77, %s80
      %p86 = scmp.eq.s32.totalorder %s14, 0
      %p87 = por %p85, %p86
      %p88 = scmp.ne.s32.totalorder %s77, %s80
      %p89 = scmp.eq.s32.totalorder %s19, 1
      %p90 = por %p88, %p89
      %p91 = scmp.ne.s32.totalorder %s80, %s81
      %p92 = scmp.eq.s32.totalorder %s19, 0
      %p93 = por %p91, %p92
      %p94 = scmp.ne.s32.totalorder %s80, %s81
      %p95 = scmp.eq.s32.totalorder %s20, 1
      %p96 = por %p94, %p95
      %p98 = scmp.ne.s32.totalorder %s81, %s97
      %p99 = scmp.eq.s32.totalorder %s20, 0
      %p100 = por %p98, %p99
      %s101 = ssub.s32 %s21, %s40
      %s102 = ssub.s32 %s22, %s36
      %s103 = sor.u32 %s101, %s102
      %p104 = scmp.eq.s32.totalorder %s103, 0
      %s106 = sadd.s32 %s105, 1
      %s107 = scalar_select %p104, %s105, %s106
      %p110 = pneg %p104
      %p111 = scmp.eq.s32.totalorder %s14, 1
      %p112 = por %p110, %p111
      %p113 = scmp.ne.s32.totalorder %s105, %s108
      %p114 = scmp.eq.s32.totalorder %s14, 0
      %p115 = por %p113, %p114
      %p116 = scmp.ne.s32.totalorder %s105, %s108
      %p117 = scmp.eq.s32.totalorder %s19, 1
      %p118 = por %p116, %p117
      %p119 = scmp.ne.s32.totalorder %s108, %s109
      %p120 = scmp.eq.s32.totalorder %s19, 0
      %p121 = por %p119, %p120
      %p122 = scmp.ne.s32.totalorder %s108, %s109
      %p123 = scmp.eq.s32.totalorder %s20, 1
      %p124 = por %p122, %p123
      %p126 = scmp.ne.s32.totalorder %s109, %s125
      %p127 = scmp.eq.s32.totalorder %s20, 0
      %p128 = por %p126, %p127
      %p129 = scmp.le.s32.totalorder 1, %s14
      %p130 = scmp.lt.s32.totalorder %s14, 3
      %p131 = pnand %p129, %p130
      %p132 = pneg %p131
      // Predicated region
      $region9: #{tpu_custom_call.1} parent=5 // pred_check
        _
      $region10: #{tpu_custom_call.1} parent=5 // pred_check_branch
        %134 = sbr.rel (%p131) target = $region12
      $region11: #{tpu_custom_call.1} parent=5 // pred_region
        %s135 = ssub.s32 %s14, 1
      $region12: #{tpu_custom_call.1} parent=5 // pred_fallthru
        _
      %p136 = scmp.lt.s32.totalorder %s14, 2
      // Predicated region
      $region13: #{tpu_custom_call.1} parent=5 // pred_check
        %p137 = pneg %p136
      $region14: #{tpu_custom_call.1} parent=5 // pred_check_branch
        %139 = sbr.rel (%p137) target = $region16
      $region15: #{tpu_custom_call.1} parent=5 // pred_region
        // Predicated region
        $region17: #{tpu_custom_call.1} parent=15 // pred_check
          %p140 = pneg %p57
        $region18: #{tpu_custom_call.1} parent=15 // pred_check_branch
          %142 = sbr.rel (%p140) target = $region20
        $region19: #{tpu_custom_call.1} parent=15 // pred_region
          %s143 = sand.u32 %s47, 1
          %s144 = scalar_lea.sflag [#allocation3], %s143
          %s145 = sand.u32 %s47, 1
          %s146 = smul.addr %s145, 8
          %s147 = scalar_lea.vmem [#allocation2], %s146
          %s148 = sadd.s32 %s22, %s23
          %s150 = ssub.s32 128, 128
          %151 = vsyncadd %s144, %s150
          %s152 = smul.addr %s21, 4
          %s153 = sadd.s32 %s148, %s152
          %s154 = smul.addr %s153, 32
          %s155 = scalar_lea.hbm %s0, %s154
          %s156 = sshll.u32 %s147, 4
          %s157 = int_to_ptr.vmem [resolvable:$true] %s156
          %162 = dma.hbm_to_vmem [thread:$0]  %s155, 128, %s157, %s144, 32, 32, 2
        $region20: #{tpu_custom_call.1} parent=15 // pred_fallthru
          _
        // Predicated region
        $region21: #{tpu_custom_call.1} parent=15 // pred_check
          %p163 = pneg %p87
        $region22: #{tpu_custom_call.1} parent=15 // pred_check_branch
          %165 = sbr.rel (%p163) target = $region24
        $region23: #{tpu_custom_call.1} parent=15 // pred_region
          %s166 = sadd.s32 %s22, %s23
          %p167 = scmp.lt.s32.totalorder %s21, 1
          %s168 = scalar_select %p167, %s21, 1
          %p169 = scmp.lt.s32.totalorder %s166, 0
          %s170 = scalar_select %p169, %s166, 0
          %s171 = sadd.s32 %s170, %s168
          %s172 = scalar_lea.vmem %s1, %s171
          %s173 = sadd.s32 %s22, %s23
        $region24: #{tpu_custom_call.1} parent=15 // pred_fallthru
          _
      $region16: #{tpu_custom_call.1} parent=5 // pred_fallthru
        _
      %p174 = scmp.le.s32.totalorder 1, %s14
      %p175 = scmp.lt.s32.totalorder %s14, 3
      %p176 = pnand %p174, %p175
      %p177 = pneg %p176
      // Predicated region
      $region25: #{tpu_custom_call.1} parent=5 // pred_check
        _
      $region26: #{tpu_custom_call.1} parent=5 // pred_check_branch
        %179 = sbr.rel (%p176) target = $region28
      $region27: #{tpu_custom_call.1} parent=5 // pred_region
        %s180 = ssub.s32 %s14, 1
        %s181 = sand.u32 %s50, 1
        %s182 = scalar_lea.sflag [#allocation3], %s181
        %s183 = sand.u32 %s50, 1
        %s184 = smul.addr %s183, 8
        %s185 = scalar_lea.vmem [#allocation2], %s184
        // Predicated region
        $region29: #{tpu_custom_call.1} parent=27 // pred_check
          %p186 = pneg %p63
        $region30: #{tpu_custom_call.1} parent=27 // pred_check_branch
          %188 = sbr.rel (%p186) target = $region32
        $region31: #{tpu_custom_call.1} parent=27 // pred_region
          %189 = dma.done %s182, 128
        $region32: #{tpu_custom_call.1} parent=27 // pred_fallthru
          _
        %s190 = sand.u32 %s50, 1
        %s191 = scalar_lea.sflag [#allocation3], %s190
        %s192 = sand.u32 %s50, 1
        %s193 = smul.addr %s192, 8
        %s194 = scalar_lea.vmem [#allocation2], %s193
        %p195 = pneg %p63
        %p196 = pneg %p60
        %s197 = sadd.s32 %s25, %s26
        %p198 = scmp.lt.s32.totalorder %s24, 1
        %s199 = scalar_select %p198, %s24, 1
        %p200 = scmp.lt.s32.totalorder %s197, 0
        %s201 = scalar_select %p200, %s197, 0
        %s202 = sadd.s32 %s201, %s199
        %s203 = scalar_lea.vmem %s1, %s202
        %p204 = pneg %p93
        %p205 = pneg %p90
        %p206 = pneg %p121
        %p207 = pneg %p118
        %s208 = sand.u32 %s108, 1
        %s209 = scalar_lea.sflag [#allocation4], %s208
        %s210 = sand.u32 %s108, 1
        %s211 = smul.addr %s210, 12
        %s212 = scalar_lea.vmem [#allocation5], %s211
        %s213 = sadd.s32 %s25, %s26
        %s214 = sadd.s32 %s25, %s26
        %p215 = scmp.lt.s32.totalorder %s24, 1
        %s216 = scalar_select %p215, %s24, 1
        %p217 = scmp.lt.s32.totalorder %s214, 0
        %s218 = scalar_select %p217, %s214, 0
        %s219 = sadd.s32 %s218, %s216
        %s220 = scalar_lea.vmem %s1, %s219
        %s221 = sadd.s32 %s25, %s26
        %p222 = scmp.eq.s32.totalorder %s26, 0
        // Predicated region
        $region33: #{tpu_custom_call.1} parent=27 // pred_check
          %p223 = pneg %p222
        $region34: #{tpu_custom_call.1} parent=27 // pred_check_branch
          %225 = sbr.rel (%p223) target = $region36
        $region35: #{tpu_custom_call.1} parent=27 // pred_region
          %226 = vst [vmem:[%s212] sm:$0x1] 0.0
          %227 = vst [vmem:[%s212 + $0x1] sm:$0x1] 0.0
          %228 = vst [vmem:[%s212 + $0x2] sm:$0x1] 0.0
          %229 = vst [vmem:[%s212 + $0x3] sm:$0x1] 0.0
          %230 = vst [vmem:[%s212 + $0x4] sm:$0x1] 0.0
          %231 = vst [vmem:[%s212 + $0x5] sm:$0x1] 0.0
          %232 = vst [vmem:[%s212 + $0x6] sm:$0x1] 0.0
          %233 = vst [vmem:[%s212 + $0x7] sm:$0x1] 0.0
          %234 = vst [vmem:[%s212 + $0x8] sm:$0x1] 0.0
          %235 = vst [vmem:[%s212 + $0x9] sm:$0x1] 0.0
          %236 = vst [vmem:[%s212 + $0xa] sm:$0x1] 0.0
          %237 = vst [vmem:[%s212 + $0xb] sm:$0x1] 0.0
        $region36: #{tpu_custom_call.1} parent=27 // pred_fallthru
          _
        %v238 = vld [vmem:[%s220] sm:$0x1]
        %v239 = vunpack.c.0.s8 %v238
        %v240 = vld [vmem:[%s185] sm:$0x3]
        %s241 = scalar_lea.vmem %s185, 2 [#allocation2]
        %v242 = vld [vmem:[%s241] sm:$0x3]
        %v243 = vmax.f32 %v240, %v242
        %s244 = scalar_lea.vmem %s185, 4 [#allocation2]
        %v245 = vld [vmem:[%s244] sm:$0x3]
        %v246 = vmax.f32 %v243, %v245
        %s247 = scalar_lea.vmem %s185, 6 [#allocation2]
        %v248 = vld [vmem:[%s247] sm:$0x3]
        %v249 = vmax.f32 %v246, %v248
        %v250 = vsub.f32 %v240, %v249
        %v251 = vmul.f32 %v250, 1.442695
        %v252 = vpow.pop %v251
        %v253 = vsub.f32 %v242, %v249
        %v254 = vmul.f32 %v253, 1.442695
        %v255 = vpow.pop %v254
        %v256 = vsub.f32 %v245, %v249
        %v257 = vmul.f32 %v256, 1.442695
        %v258 = vpow.pop %v257
        %v259 = vsub.f32 %v248, %v249
        %v260 = vmul.f32 %v259, 1.442695
        %v261 = vpow.pop %v260
        %v262 = vadd.f32 %v252, %v255
        %v263 = vadd.f32 %v262, %v258
        %v264 = vadd.f32 %v263, %v261
        %v265 = vrcp.pop %v264
        %v266 = vmul.f32 %v264, %v265
        %v267 = vsub.f32 2.0, %v266
        %v268 = vmul.f32 %v265, %v267
        %v269 = vmul.f32 %v252, %v268
        %vm270 = vcmp.eq.s32.totalorder %v239, 0
        %v271 = vld [vmem:[%s212] sm:$0x1]
        %v272 = vsel %vm270, %v269, 0.0
        %vm273 = vcmask 1041408
        %v274 = vsel %vm273, %v272, 0.0
        %v275 = vrot.slane %v274, 4
        %v276 = vadd.f32 %v274, %v275
        %v277 = vrot.slane %v276, 2
        %v278 = vadd.f32 %v276, %v277
        %v279 = vrot.slane %v278, 1
        %v280 = vadd.f32 %v278, %v279
        %v281 = vadd.f32 %v271, %v280
        %282 = vst [vmem:[%s212] sm:$0x1] %v281
        %s283 = scalar_lea.vmem %s212, 4 [#allocation5]
        %v284 = vld [vmem:[%s283] sm:$0x1]
        %v285 = vsel %vm273, %v269, 0.0
        %v286 = vrot.slane %v285, 4
        %v287 = vadd.f32 %v285, %v286
        %v288 = vrot.slane %v287, 2
        %v289 = vadd.f32 %v287, %v288
        %v290 = vrot.slane %v289, 1
        %v291 = vadd.f32 %v289, %v290
        %v292 = vadd.f32 %v284, %v291
        %293 = vst [vmem:[%s283] sm:$0x1] %v292
        %s294 = scalar_lea.vmem %s212, 8 [#allocation5]
        %v295 = vld [vmem:[%s294] sm:$0x1]
        %v296 = vsel %vm270, 1, 0
        %v297 = vcvt.s32.f32 %v296
        %v298 = vsel %vm273, %v297, 0.0
        %v299 = vrot.slane %v298, 4
        %v300 = vadd.f32 %v298, %v299
        %v301 = vrot.slane %v300, 2
        %v302 = vadd.f32 %v300, %v301
        %v303 = vrot.slane %v302, 1
        %v304 = vadd.f32 %v302, %v303
        %v305 = vadd.f32 %v295, %v304
        %306 = vst [vmem:[%s294] sm:$0x1] %v305
        %v307 = vmul.f32 %v255, %v268
        %vm308 = vcmp.eq.s32.totalorder %v239, 1
        %s309 = scalar_lea.vmem %s212, 1 [#allocation5]
        %v310 = vld [vmem:[%s309] sm:$0x1]
        %v311 = vsel %vm308, %v307, 0.0
        %v312 = vsel %vm273, %v311, 0.0
        %v313 = vrot.slane %v312, 4
        %v314 = vadd.f32 %v312, %v313
        %v315 = vrot.slane %v314, 2
        %v316 = vadd.f32 %v314, %v315
        %v317 = vrot.slane %v316, 1
        %v318 = vadd.f32 %v316, %v317
        %v319 = vadd.f32 %v310, %v318
        %320 = vst [vmem:[%s309] sm:$0x1] %v319
        %s321 = scalar_lea.vmem %s212, 5 [#allocation5]
        %v322 = vld [vmem:[%s321] sm:$0x1]
        %v323 = vsel %vm273, %v307, 0.0
        %v324 = vrot.slane %v323, 4
        %v325 = vadd.f32 %v323, %v324
        %v326 = vrot.slane %v325, 2
        %v327 = vadd.f32 %v325, %v326
        %v328 = vrot.slane %v327, 1
        %v329 = vadd.f32 %v327, %v328
        %v330 = vadd.f32 %v322, %v329
        %331 = vst [vmem:[%s321] sm:$0x1] %v330
        %s332 = scalar_lea.vmem %s212, 9 [#allocation5]
        %v333 = vld [vmem:[%s332] sm:$0x1]
        %v334 = vsel %vm308, 1, 0
        %v335 = vcvt.s32.f32 %v334
        %v336 = vsel %vm273, %v335, 0.0
        %v337 = vrot.slane %v336, 4
        %v338 = vadd.f32 %v336, %v337
        %v339 = vrot.slane %v338, 2
        %v340 = vadd.f32 %v338, %v339
        %v341 = vrot.slane %v340, 1
        %v342 = vadd.f32 %v340, %v341
        %v343 = vadd.f32 %v333, %v342
        %344 = vst [vmem:[%s332] sm:$0x1] %v343
        %v345 = vmul.f32 %v258, %v268
        %vm346 = vcmp.eq.s32.totalorder %v239, 2
        %s347 = scalar_lea.vmem %s212, 2 [#allocation5]
        %v348 = vld [vmem:[%s347] sm:$0x1]
        %v349 = vsel %vm346, %v345, 0.0
        %v350 = vsel %vm273, %v349, 0.0
        %v351 = vrot.slane %v350, 4
        %v352 = vadd.f32 %v350, %v351
        %v353 = vrot.slane %v352, 2
        %v354 = vadd.f32 %v352, %v353
        %v355 = vrot.slane %v354, 1
        %v356 = vadd.f32 %v354, %v355
        %v357 = vadd.f32 %v348, %v356
        %358 = vst [vmem:[%s347] sm:$0x1] %v357
        %s359 = scalar_lea.vmem %s212, 6 [#allocation5]
        %v360 = vld [vmem:[%s359] sm:$0x1]
        %v361 = vsel %vm273, %v345, 0.0
        %v362 = vrot.slane %v361, 4
        %v363 = vadd.f32 %v361, %v362
        %v364 = vrot.slane %v363, 2
        %v365 = vadd.f32 %v363, %v364
        %v366 = vrot.slane %v365, 1
        %v367 = vadd.f32 %v365, %v366
        %v368 = vadd.f32 %v360, %v367
        %369 = vst [vmem:[%s359] sm:$0x1] %v368
        %s370 = scalar_lea.vmem %s212, 10 [#allocation5]
        %v371 = vld [vmem:[%s370] sm:$0x1]
        %v372 = vsel %vm346, 1, 0
        %v373 = vcvt.s32.f32 %v372
        %v374 = vsel %vm273, %v373, 0.0
        %v375 = vrot.slane %v374, 4
        %v376 = vadd.f32 %v374, %v375
        %v377 = vrot.slane %v376, 2
        %v378 = vadd.f32 %v376, %v377
        %v379 = vrot.slane %v378, 1
        %v380 = vadd.f32 %v378, %v379
        %v381 = vadd.f32 %v371, %v380
        %382 = vst [vmem:[%s370] sm:$0x1] %v381
        %v383 = vmul.f32 %v261, %v268
        %vm384 = vcmp.eq.s32.totalorder %v239, 3
        %s385 = scalar_lea.vmem %s212, 3 [#allocation5]
        %v386 = vld [vmem:[%s385] sm:$0x1]
        %v387 = vsel %vm384, %v383, 0.0
        %v388 = vsel %vm273, %v387, 0.0
        %v389 = vrot.slane %v388, 4
        %v390 = vadd.f32 %v388, %v389
        %v391 = vrot.slane %v390, 2
        %v392 = vadd.f32 %v390, %v391
        %v393 = vrot.slane %v392, 1
        %v394 = vadd.f32 %v392, %v393
        %v395 = vadd.f32 %v386, %v394
        %396 = vst [vmem:[%s385] sm:$0x1] %v395
        %s397 = scalar_lea.vmem %s212, 7 [#allocation5]
        %v398 = vld [vmem:[%s397] sm:$0x1]
        %v399 = vsel %vm273, %v383, 0.0
        %v400 = vrot.slane %v399, 4
        %v401 = vadd.f32 %v399, %v400
        %v402 = vrot.slane %v401, 2
        %v403 = vadd.f32 %v401, %v402
        %v404 = vrot.slane %v403, 1
        %v405 = vadd.f32 %v403, %v404
        %v406 = vadd.f32 %v398, %v405
        %407 = vst [vmem:[%s397] sm:$0x1] %v406
        %s408 = scalar_lea.vmem %s212, 11 [#allocation5]
        %v409 = vld [vmem:[%s408] sm:$0x1]
        %v410 = vsel %vm384, 1, 0
        %v411 = vcvt.s32.f32 %v410
        %v412 = vsel %vm273, %v411, 0.0
        %v413 = vrot.slane %v412, 4
        %v414 = vadd.f32 %v412, %v413
        %v415 = vrot.slane %v414, 2
        %v416 = vadd.f32 %v414, %v415
        %v417 = vrot.slane %v416, 1
        %v418 = vadd.f32 %v416, %v417
        %v419 = vadd.f32 %v409, %v418
        %420 = vst [vmem:[%s408] sm:$0x1] %v419
        %s421 = sand.u32 %s108, 1
        %s422 = scalar_lea.sflag [#allocation4], %s421
        %s423 = sand.u32 %s108, 1
        %s424 = smul.addr %s423, 12
        %s425 = scalar_lea.vmem [#allocation5], %s424
        // Predicated region
        $region37: #{tpu_custom_call.1} parent=27 // pred_check
          %p426 = pneg %p118
        $region38: #{tpu_custom_call.1} parent=27 // pred_check_branch
          %428 = sbr.rel (%p426) target = $region40
        $region39: #{tpu_custom_call.1} parent=27 // pred_region
          %s430 = ssub.s32 192, 192
          %431 = vsyncadd %s422, %s430
          %s432 = smul.addr %s25, 12
          %s433 = smul.addr %s24, 12
          %s434 = sadd.s32 %s432, %s433
          %s435 = smul.addr %s434, 16
          %s436 = scalar_lea.hbm %s2, %s435
          %s437 = sshll.u32 %s425, 4
          %s438 = int_to_ptr.vmem [resolvable:$true] %s437
          %443 = dma.vmem_to_hbm [thread:$0]  %s438, 192, %s436, %s422, 16, 16, 1
        $region40: #{tpu_custom_call.1} parent=27 // pred_fallthru
          _
      $region28: #{tpu_custom_call.1} parent=5 // pred_fallthru
        _
      %p444 = scmp.le.s32.totalorder 2, %s14
      // Predicated region
      $region41: #{tpu_custom_call.1} parent=5 // pred_check
        %p445 = pneg %p444
      $region42: #{tpu_custom_call.1} parent=5 // pred_check_branch
        %447 = sbr.rel (%p445) target = $region44
      $region43: #{tpu_custom_call.1} parent=5 // pred_region
        %s448 = ssub.s32 %s14, 2
        // Predicated region
        $region45: #{tpu_custom_call.1} parent=43 // pred_check
          %p449 = pneg %p124
        $region46: #{tpu_custom_call.1} parent=43 // pred_check_branch
          %451 = sbr.rel (%p449) target = $region48
        $region47: #{tpu_custom_call.1} parent=43 // pred_region
          %s452 = sand.u32 %s109, 1
          %s453 = scalar_lea.sflag [#allocation4], %s452
          %s454 = sand.u32 %s109, 1
          %s455 = smul.addr %s454, 12
          %s456 = scalar_lea.vmem [#allocation5], %s455
          %457 = dma.done %s453, 192
        $region48: #{tpu_custom_call.1} parent=43 // pred_fallthru
          _
      $region44: #{tpu_custom_call.1} parent=5 // pred_fallthru
        _
    $region6: #{tpu_custom_call.1} parent=1 // loop_footer
      %s18 = sadd.s32 1, %s14
    $region7: #{tpu_custom_call.1} parent=1 // loop_footer_branch
      %13 = sbr.rel target = $region3
    $region8: #{tpu_custom_call.1} parent=1 // loop_exit
      _
    %458 = vsyncpa [#allocation3], 1
    %s459 = scalar_lea.sflag [#allocation3], 1
    %460 = vsyncpa %s459, 1
    %461 = vsyncpa [#allocation4], 1
    %s462 = scalar_lea.sflag [#allocation4], 1
    %463 = vsyncpa %s462, 1

</llo_original>
